<compile_context>
chip_gen: v7x
topology: tpu7x:2x2x1
jax: 0.10.0
libtpu: 0.0.40
codegen_flags: <defaults>
</compile_context>

<pallas_src>
import math
from functools import partial

import jax
import jax.numpy as jnp
from jax.experimental import pallas as pl
from jax.experimental.pallas import tpu as pltpu


def _round_up(x, m):
    return ((x + m - 1) // m) * m


# ---------------------------------------------------------------------------
# Kernel A: support1 = x @ W1   (row-tiled, bf16 MXU, f32 accumulate)
# ---------------------------------------------------------------------------
def _support_kernel(x_ref, w_ref, o_ref):
    acc = jnp.dot(x_ref[...].astype(jnp.bfloat16), w_ref[...],
                  preferred_element_type=jnp.float32)
    o_ref[...] = acc.astype(o_ref.dtype)


# ---------------------------------------------------------------------------
# Kernel B: s2 = relu(adj @ s1 + b1) @ W2
# grid = (row_tiles_i, reduction_tiles_k); k is last ("arbitrary").
# ---------------------------------------------------------------------------
def _layer1_kernel(adj_ref, s1_ref, b1_ref, w2_ref, o_ref, acc_ref):
    k = pl.program_id(1)

    @pl.when(k == 0)
    def _():
        acc_ref[...] = jnp.zeros_like(acc_ref)

    acc_ref[...] += jnp.dot(adj_ref[...], s1_ref[...],
                            preferred_element_type=jnp.float32)

    @pl.when(k == pl.num_programs(1) - 1)
    def _():
        h1 = jnp.maximum(acc_ref[...] + b1_ref[...], 0.0)     # f32 bias + relu
        # Dropout (inference) -> identity.
        o_ref[...] = jnp.dot(h1.astype(jnp.bfloat16), w2_ref[...],
                             preferred_element_type=jnp.float32).astype(o_ref.dtype)


# ---------------------------------------------------------------------------
# Kernel C: out = log_softmax(adj @ s2 + b2)  with padded-class masking
# ---------------------------------------------------------------------------
def _layer2_kernel(nclass, adj_ref, s2_ref, b2_ref, o_ref, acc_ref):
    k = pl.program_id(1)

    @pl.when(k == 0)
    def _():
        acc_ref[...] = jnp.zeros_like(acc_ref)

    acc_ref[...] += jnp.dot(adj_ref[...], s2_ref[...],
                            preferred_element_type=jnp.float32)

    @pl.when(k == pl.num_programs(1) - 1)
    def _():
        h2 = acc_ref[...] + b2_ref[...]
        # Mask padded class columns so they don't corrupt the normalization.
        col = jax.lax.broadcasted_iota(jnp.int32, h2.shape, 1)
        h2 = jnp.where(col < nclass, h2, -jnp.inf)
        m = jnp.max(h2, axis=1, keepdims=True)
        z = h2 - m
        lse = jnp.log(jnp.sum(jnp.exp(z), axis=1, keepdims=True))
        o_ref[...] = z - lse


# ---------------------------------------------------------------------------
# Wrapper
# ---------------------------------------------------------------------------
def gcn_forward(x, adj, w1, b1, w2, b2, *, tile=None):
    n, nfeat = x.shape
    nhid = w1.shape[1]
    nclass = w2.shape[1]
    assert adj.shape == (n, n)

    f32, bf16 = jnp.float32, jnp.bfloat16

    # Lane-dense / MXU-friendly padded sizes.
    hpad = _round_up(nhid, 128)
    cpad = _round_up(nclass, 128)
    if tile is None:
        tile = min(256, _round_up(n, 128))   # node row / reduction tile
    npad = _round_up(n, tile)

    # Pad inputs (zeros in padded rows/cols contribute nothing to the matmuls).
    x_p = jnp.zeros((npad, nfeat), f32).at[:n, :].set(x.astype(f32))
    adj_p = jnp.zeros((npad, npad), bf16).at[:n, :n].set(adj.astype(bf16))
    w1_p = jnp.zeros((nfeat, hpad), bf16).at[:, :nhid].set(w1.astype(bf16))
    b1_p = jnp.zeros((1, hpad), f32).at[:, :nhid].set(b1.reshape(1, -1).astype(f32))
    w2_p = jnp.zeros((hpad, cpad), bf16).at[:nhid, :nclass].set(w2.astype(bf16))
    b2_p = jnp.zeros((1, cpad), f32).at[:, :nclass].set(b2.reshape(1, -1).astype(f32))

    num_i = npad // tile
    num_k = npad // tile
    vmem_limit = 48 * 1024 * 1024   # safe on v7x (64 MiB) and well under v5e/v6e

    cparams_1d = pltpu.CompilerParams(
        dimension_semantics=("parallel",), vmem_limit_bytes=vmem_limit)
    cparams_2d = pltpu.CompilerParams(
        dimension_semantics=("parallel", "arbitrary"), vmem_limit_bytes=vmem_limit)

    # --- Kernel A: s1 = x @ W1 --------------------------------------------
    s1 = pl.pallas_call(
        _support_kernel,
        out_shape=jax.ShapeDtypeStruct((npad, hpad), bf16),
        grid_spec=pltpu.PrefetchScalarGridSpec(
            num_scalar_prefetch=0,
            grid=(num_i,),
            in_specs=[
                pl.BlockSpec((tile, nfeat), lambda i: (i, 0)),
                pl.BlockSpec((nfeat, hpad), lambda i: (0, 0)),
            ],
            out_specs=pl.BlockSpec((tile, hpad), lambda i: (i, 0)),
        ),
        compiler_params=cparams_1d,
        cost_estimate=pl.CostEstimate(
            flops=2 * npad * nfeat * hpad,
            transcendentals=0,
            bytes_accessed=4 * npad * nfeat + 2 * nfeat * hpad + 2 * npad * hpad,
        ),
    )(x_p, w1_p)

    # --- Kernel B: s2 = relu(adj @ s1 + b1) @ W2 ---------------------------
    s2 = pl.pallas_call(
        _layer1_kernel,
        out_shape=jax.ShapeDtypeStruct((npad, cpad), bf16),
        grid_spec=pltpu.PrefetchScalarGridSpec(
            num_scalar_prefetch=0,
            grid=(num_i, num_k),
            in_specs=[
                pl.BlockSpec((tile, tile), lambda i, k: (i, k)),   # adj
                pl.BlockSpec((tile, hpad), lambda i, k: (k, 0)),   # s1
                pl.BlockSpec((1, hpad), lambda i, k: (0, 0)),      # b1
                pl.BlockSpec((hpad, cpad), lambda i, k: (0, 0)),   # W2 (resident)
            ],
            out_specs=pl.BlockSpec((tile, cpad), lambda i, k: (i, 0)),
            scratch_shapes=[pltpu.VMEM((tile, hpad), jnp.float32)],
        ),
        compiler_params=cparams_2d,
        cost_estimate=pl.CostEstimate(
            flops=2 * npad * npad * hpad + 2 * npad * hpad * cpad,
            transcendentals=0,
            bytes_accessed=2 * npad * npad + 2 * npad * hpad
            + 2 * hpad * cpad + 2 * npad * cpad,
        ),
    )(adj_p, s1, b1_p, w2_p)

    # --- Kernel C: out = log_softmax(adj @ s2 + b2) ------------------------
    out_p = pl.pallas_call(
        partial(_layer2_kernel, nclass),
        out_shape=jax.ShapeDtypeStruct((npad, cpad), f32),
        grid_spec=pltpu.PrefetchScalarGridSpec(
            num_scalar_prefetch=0,
            grid=(num_i, num_k),
            in_specs=[
                pl.BlockSpec((tile, tile), lambda i, k: (i, k)),   # adj
                pl.BlockSpec((tile, cpad), lambda i, k: (k, 0)),   # s2
                pl.BlockSpec((1, cpad), lambda i, k: (0, 0)),      # b2
            ],
            out_specs=pl.BlockSpec((tile, cpad), lambda i, k: (i, 0)),
            scratch_shapes=[pltpu.VMEM((tile, cpad), jnp.float32)],
        ),
        compiler_params=cparams_2d,
        cost_estimate=pl.CostEstimate(
            flops=2 * npad * npad * cpad,
            transcendentals=npad * cpad,
            bytes_accessed=2 * npad * npad + 2 * npad * cpad + 4 * npad * cpad,
        ),
    )(adj_p, s2, b2_p)

    return out_p[:n, :nclass]


def gcn_reference(x, adj, w1, b1, w2, b2):
    """Pure-JAX f32 reference mirroring the PyTorch forward (inference mode)."""
    h1 = jnp.maximum(adj @ (x @ w1) + b1, 0.0)
    h2 = adj @ (h1 @ w2) + b2
    return jax.nn.log_softmax(h2, axis=1)


def init_gcn_params(key, nfeat, nhid, nclass):
    """Mirror GraphConvolution.reset_parameters: U(-stdv, stdv), stdv = 1/sqrt(out)."""
    k1, k2, k3, k4 = jax.random.split(key, 4)
    stdv1 = 1.0 / math.sqrt(nhid)
    stdv2 = 1.0 / math.sqrt(nclass)
    w1 = jax.random.uniform(k1, (nfeat, nhid), jnp.float32, -stdv1, stdv1)
    b1 = jax.random.uniform(k2, (1, nhid), jnp.float32, -stdv1, stdv1)
    w2 = jax.random.uniform(k3, (nhid, nclass), jnp.float32, -stdv2, stdv2)
    b2 = jax.random.uniform(k4, (1, nclass), jnp.float32, -stdv2, stdv2)
    return w1, b1, w2, b2


if __name__ == "__main__":
    # Small synthetic graph: N=16 nodes, nfeat=16, nhid=32, nclass=8.
    N, NFEAT, NHID, NCLASS = 16, 16, 32, 8

    key = jax.random.PRNGKey(0)
    kx, kadj, kparams = jax.random.split(key, 3)

    x = jax.random.normal(kx, (N, NFEAT), jnp.float32)

    # Symmetric, row-normalized adjacency with self-loops (typical GCN input).
    a = (jax.random.uniform(kadj, (N, N)) < 0.3).astype(jnp.float32)
    a = jnp.maximum(a, a.T) + jnp.eye(N, dtype=jnp.float32)
    adj = a / jnp.sum(a, axis=1, keepdims=True)

    w1, b1, w2, b2 = init_gcn_params(kparams, NFEAT, NHID, NCLASS)

    out = gcn_forward(x, adj, w1, b1, w2, b2)
    jax.block_until_ready(out)

    # Sanity: shape, valid log-probabilities, and match vs f32 reference
    # (loose tolerance: matmuls run in bf16 with f32 accumulation).
    assert out.shape == (N, NCLASS)
    row_sums = jnp.sum(jnp.exp(out), axis=1)
    assert jnp.allclose(row_sums, 1.0, atol=1e-3)

    ref = gcn_reference(x, adj, w1, b1, w2, b2)
    assert jnp.max(jnp.abs(out - ref)) < 5e-2, float(jnp.max(jnp.abs(out - ref)))

    print("KERNEL_OK")
</pallas_src>

<mosaic_0001>
module attributes {stable_mosaic.version = 11 : i64} {
  func.func @_support_kernel(%arg0: i32, %arg1: memref<128x16xf32, #tpu.memory_space<vmem>>, %arg2: memref<16x128xbf16, #tpu.memory_space<vmem>>, %arg3: memref<128x128xbf16, #tpu.memory_space<vmem>>) attributes {dimension_semantics = [#tpu.dimension_semantics<parallel>], iteration_bounds = array<i64: 1>, scalar_prefetch = 0 : i64, scratch_operands = 0 : i64, tpu.core_type = #tpu.core_type<tc>, window_params = [{transform_indices = @transform_0, window_bounds = array<i64: 128, 16>}, {pipeline_mode = #tpu.pipeline_mode<synchronous>, transform_indices = @transform_1, window_bounds = array<i64: 16, 128>}, {transform_indices = @transform_2, window_bounds = array<i64: 128, 128>}]} {
    %c0 = arith.constant 0 : index
    %c0_0 = arith.constant 0 : index
    %0 = vector.load %arg1[%c0, %c0_0] : memref<128x16xf32, #tpu.memory_space<vmem>>, vector<128x16xf32>
    %1 = arith.truncf %0 : vector<128x16xf32> to vector<128x16xbf16>
    %c0_1 = arith.constant 0 : index
    %c0_2 = arith.constant 0 : index
    %2 = vector.load %arg2[%c0_1, %c0_2] : memref<16x128xbf16, #tpu.memory_space<vmem>>, vector<16x128xbf16>
    %cst = arith.constant dense<0.000000e+00> : vector<128x128xf32>
    %3 = tpu.matmul %1, %2, %cst {dimension_numbers = #tpu.dot_dimension_numbers<[1], [0], [0], [1], [0, 0, 1, 1], [], []>} : vector<128x16xbf16>, vector<16x128xbf16>, vector<128x128xf32> -> vector<128x128xf32>
    %4 = arith.truncf %3 : vector<128x128xf32> to vector<128x128xbf16>
    %c0_3 = arith.constant 0 : index
    %c0_4 = arith.constant 0 : index
    %5 = vector.load %arg3[%c0_3, %c0_4] : memref<128x128xbf16, #tpu.memory_space<vmem>>, vector<128x128xbf16>
    tpu.vector_store %arg3[%c0_3, %c0_4], %4 {strides = array<i32>} : memref<128x128xbf16, #tpu.memory_space<vmem>>, vector<128x128xbf16>,
    return
  }
  func.func @transform_0(%arg0: i32) -> (i32, i32) {
    %c0_i32 = arith.constant 0 : i32
    %c0_i32_0 = arith.constant 0 : i32
    return %arg0, %c0_i32 : i32, i32
  }
  func.func @transform_1(%arg0: i32) -> (i32, i32) {
    %c0_i32 = arith.constant 0 : i32
    %c0_i32_0 = arith.constant 0 : i32
    %c0_i32_1 = arith.constant 0 : i32
    return %c0_i32, %c0_i32_0 : i32, i32
  }
  func.func @transform_2(%arg0: i32) -> (i32, i32) {
    %c0_i32 = arith.constant 0 : i32
    %c0_i32_0 = arith.constant 0 : i32
    return %arg0, %c0_i32 : i32, i32
  }
}

</mosaic_0001>

<llo_original>
// kernel: tpu_custom_call.1
$region0: #{tpu_custom_call.1}
  #allocation0 [shape = 'u32[]', space=smem, size = 0x4, offset = 0x4, fixed_abs, tag = 'smem constant byte address 0x4 - core index']
  #allocation1 [shape = 'u32[144,128]{1,0:T(1,128)}', space=vmem, size = 0x12000, scoped, tag = 'internal scratch']
  %s0 = inlined_call_operand.vmem [shape: f32[128,16], index: 0, kind: input, shape index: {}]
  %s1 = inlined_call_operand.vmem [shape: bf16[16,128], index: 1, kind: input, shape index: {}]
  %s2 = inlined_call_operand.hbm [shape: bf16[128,128], index: 2, kind: output, shape index: {}]
  %s3 = sld [smem:[#allocation0]]
  $region18: #{tpu_custom_call.1} parent=0
    _
  %s5 = ssub.s32 1, %s3
  %s6 = scalar_select 0, %s5, %s3
  $region1: #{tpu_custom_call.1} parent=0
    #allocation2 [shape = 'u8[32768]{0}', space=vmem, size = 0x8000, scoped, tag = 'output window, operand 0, single buffered']
    #allocation3 [shape = 's32[1]{0}', space=sflag, size = 0x4, scoped, tag = 'scoped memory for tpu_custom_call.1']
    %7 = vsyncpa [#allocation3], 0
    // Predicated region
    $region2: #{tpu_custom_call.1} parent=1 // pred_check
      _
    $region3: #{tpu_custom_call.1} parent=1 // pred_check_branch
      %9 = sbr.rel (0) target = $region5
    $region4: #{tpu_custom_call.1} parent=1 // pred_region
      _
    $region5: #{tpu_custom_call.1} parent=1 // pred_fallthru
      _
    // Predicated region
    $region6: #{tpu_custom_call.1} parent=1 // pred_check
      _
    $region7: #{tpu_custom_call.1} parent=1 // pred_check_branch
      %11 = sbr.rel (0) target = $region9
    $region8: #{tpu_custom_call.1} parent=1 // pred_region
      _
    $region9: #{tpu_custom_call.1} parent=1 // pred_fallthru
      _
    %v13 = vld [vmem:[%s0] sm:$0xff]
    %v14 = vld [vmem:[%s0 + $0x8] sm:$0xff]
    %v15 = vld [vmem:[%s0 + $0x10] sm:$0xff]
    %v16 = vld [vmem:[%s0 + $0x18] sm:$0xff]
    %v17 = vld [vmem:[%s0 + $0x20] sm:$0xff]
    %v18 = vld [vmem:[%s0 + $0x28] sm:$0xff]
    %v19 = vld [vmem:[%s0 + $0x30] sm:$0xff]
    %v20 = vld [vmem:[%s0 + $0x38] sm:$0xff]
    %v21 = vld [vmem:[%s0 + $0x40] sm:$0xff]
    %v22 = vld [vmem:[%s0 + $0x48] sm:$0xff]
    %v23 = vld [vmem:[%s0 + $0x50] sm:$0xff]
    %v24 = vld [vmem:[%s0 + $0x58] sm:$0xff]
    %v25 = vld [vmem:[%s0 + $0x60] sm:$0xff]
    %v26 = vld [vmem:[%s0 + $0x68] sm:$0xff]
    %v27 = vld [vmem:[%s0 + $0x70] sm:$0xff]
    %v28 = vld [vmem:[%s0 + $0x78] sm:$0xff]
    %v29 = vpack.c.bf16 %v14, %v13
    %v30 = vpack.c.bf16 %v16, %v15
    %v31 = vpack.c.bf16 %v18, %v17
    %v32 = vpack.c.bf16 %v20, %v19
    %v33 = vpack.c.bf16 %v22, %v21
    %v34 = vpack.c.bf16 %v24, %v23
    %v35 = vpack.c.bf16 %v26, %v25
    %v36 = vpack.c.bf16 %v28, %v27
    %v37 = vld [vmem:[%s1] sm:$0xf]
    %v38 = vld [vmem:[%s1 + $0x4] sm:$0xf]
    %v41 = vunpack.c.l.b16 %v37
    %v42 = vunpack.c.l.b16 %v38
    %v43 = vpack.c.b16 %v42, %v41
    %vm45 = vcmask 130048
    %v47 = vsel %vm45, %v29, 0
    %v50 = vsel %vm45, %v30, 0
    %v53 = vsel %vm45, %v31, 0
    %v56 = vsel %vm45, %v32, 0
    %v59 = vsel %vm45, %v33, 0
    %v62 = vsel %vm45, %v34, 0
    %v65 = vsel %vm45, %v35, 0
    %v68 = vsel %vm45, %v36, 0
    %70 = vmatprep.subr.bf16.mxu0 0
    %71 = vmatpush1.bf16.msra.mxu0 %v43
    %72 = vmatprep.subr.bf16.mxu0 0
    %73 = vmatpush1.bf16.msra.mxu0 0
    %74 = vmatprep.subr.bf16.mxu0 0
    %75 = vmatpush1.bf16.msra.mxu0 0
    %76 = vmatprep.subr.bf16.mxu0 0
    %77 = vmatpush1.bf16.msra.mxu0 0
    %78 = vmatprep.subr.bf16.mxu0 0
    %79 = vmatpush1.bf16.msra.mxu0 0
    %80 = vmatprep.subr.bf16.mxu0 0
    %81 = vmatpush1.bf16.msra.mxu0 0
    %82 = vmatprep.subr.bf16.mxu0 0
    %83 = vmatpush1.bf16.msra.mxu0 0
    %84 = vmatprep.subr.bf16.mxu0 0
    %85 = vmatpush1.bf16.msra.mxu0 0
    %86 = vmatprep.subr.bf16.mxu0 0
    %87 = vmatpush1.bf16.msra.mxu0 0
    %88 = vmatprep.subr.bf16.mxu0 0
    %89 = vmatpush1.bf16.msra.mxu0 0
    %90 = vmatprep.subr.bf16.mxu0 0
    %91 = vmatpush1.bf16.msra.mxu0 0
    %92 = vmatprep.subr.bf16.mxu0 0
    %93 = vmatpush1.bf16.msra.mxu0 0
    %94 = vmatprep.subr.bf16.mxu0 0
    %95 = vmatpush1.bf16.msra.mxu0 0
    %96 = vmatprep.subr.bf16.mxu0 0
    %97 = vmatpush1.bf16.msra.mxu0 0
    %98 = vmatprep.subr.bf16.mxu0 0
    %99 = vmatpush1.bf16.msra.mxu0 0
    %100 = vmatprep.subr.bf16.mxu0 0
    %101 = vmatpush1.bf16.msra.mxu0 0
    %102 = vmatprep.mubr.bf16.mxu0 0
    %103 = vmatmul.mubr.bf16.gmra.mrb[0].mxu0 %v47
    %v104 = vpop.f32.mrb[0].mxu0
    %v105 = vadd.f32 0.0, %v104
    %v106 = vpop.f32.mrb[0].mxu0
    %v107 = vpop.f32.mrb[0].mxu0
    %v108 = vadd.f32 0.0, %v107
    %v109 = vpop.f32.mrb[0].mxu0
    %110 = vmatprep.mubr.bf16.mxu0 0
    %111 = vmatmul.mubr.bf16.gmra.mrb[0].mxu0 %v50
    %v112 = vpop.f32.mrb[0].mxu0
    %v113 = vadd.f32 0.0, %v112
    %v114 = vpop.f32.mrb[0].mxu0
    %v115 = vpop.f32.mrb[0].mxu0
    %v116 = vadd.f32 0.0, %v115
    %v117 = vpop.f32.mrb[0].mxu0
    %118 = vmatprep.mubr.bf16.mxu0 0
    %119 = vmatmul.mubr.bf16.gmra.mrb[0].mxu0 %v53
    %v120 = vpop.f32.mrb[0].mxu0
    %v121 = vadd.f32 0.0, %v120
    %v122 = vpop.f32.mrb[0].mxu0
    %v123 = vpop.f32.mrb[0].mxu0
    %v124 = vadd.f32 0.0, %v123
    %v125 = vpop.f32.mrb[0].mxu0
    %126 = vmatprep.mubr.bf16.mxu0 0
    %127 = vmatmul.mubr.bf16.gmra.mrb[0].mxu0 %v56
    %v128 = vpop.f32.mrb[0].mxu0
    %v129 = vadd.f32 0.0, %v128
    %v130 = vpop.f32.mrb[0].mxu0
    %v131 = vpop.f32.mrb[0].mxu0
    %v132 = vadd.f32 0.0, %v131
    %v133 = vpop.f32.mrb[0].mxu0
    %134 = vmatprep.mubr.bf16.mxu0 0
    %135 = vmatmul.mubr.bf16.gmra.mrb[0].mxu0 %v59
    %v136 = vpop.f32.mrb[0].mxu0
    %v137 = vadd.f32 0.0, %v136
    %v138 = vpop.f32.mrb[0].mxu0
    %v139 = vpop.f32.mrb[0].mxu0
    %v140 = vadd.f32 0.0, %v139
    %v141 = vpop.f32.mrb[0].mxu0
    %142 = vmatprep.mubr.bf16.mxu0 0
    %143 = vmatmul.mubr.bf16.gmra.mrb[0].mxu0 %v62
    %v144 = vpop.f32.mrb[0].mxu0
    %v145 = vadd.f32 0.0, %v144
    %v146 = vpop.f32.mrb[0].mxu0
    %v147 = vpop.f32.mrb[0].mxu0
    %v148 = vadd.f32 0.0, %v147
    %v149 = vpop.f32.mrb[0].mxu0
    %150 = vmatprep.mubr.bf16.mxu0 0
    %151 = vmatmul.mubr.bf16.gmra.mrb[0].mxu0 %v65
    %v152 = vpop.f32.mrb[0].mxu0
    %v153 = vadd.f32 0.0, %v152
    %v154 = vpop.f32.mrb[0].mxu0
    %v155 = vpop.f32.mrb[0].mxu0
    %v156 = vadd.f32 0.0, %v155
    %v157 = vpop.f32.mrb[0].mxu0
    %158 = vmatprep.mubr.bf16.mxu0 0
    %159 = vmatmul.mubr.bf16.gmra.mrb[0].mxu0 %v68
    %v160 = vpop.f32.mrb[0].mxu0
    %v161 = vadd.f32 0.0, %v160
    %v162 = vpop.f32.mrb[0].mxu0
    %v163 = vpop.f32.mrb[0].mxu0
    %v164 = vadd.f32 0.0, %v163
    %v165 = vpop.f32.mrb[0].mxu0
    %166 = vdwg.mxu0
    %v167 = vpack.c.bf16 %v108, %v105
    %v168 = vpack.c.bf16 %v116, %v113
    %v169 = vpack.c.bf16 %v124, %v121
    %v170 = vpack.c.bf16 %v132, %v129
    %v171 = vpack.c.bf16 %v140, %v137
    %v172 = vpack.c.bf16 %v148, %v145
    %v173 = vpack.c.bf16 %v156, %v153
    %v174 = vpack.c.bf16 %v164, %v161
    %v183 = vunpack.c.l.b16 %v167
    %v184 = vunpack.c.h.b16 %v167
    %v185 = vunpack.c.l.b16 %v168
    %v186 = vunpack.c.h.b16 %v168
    %v187 = vunpack.c.l.b16 %v169
    %v188 = vunpack.c.h.b16 %v169
    %v189 = vunpack.c.l.b16 %v170
    %v190 = vunpack.c.h.b16 %v170
    %v191 = vunpack.c.l.b16 %v171
    %v192 = vunpack.c.h.b16 %v171
    %v193 = vunpack.c.l.b16 %v172
    %v194 = vunpack.c.h.b16 %v172
    %v195 = vunpack.c.l.b16 %v173
    %v196 = vunpack.c.h.b16 %v173
    %v197 = vunpack.c.l.b16 %v174
    %v198 = vunpack.c.h.b16 %v174
    %v199 = vpack.c.b16 %v183, %v183
    %v200 = vpack.c.b16 %v184, %v184
    %v201 = vpack.c.b16 %v185, %v185
    %v202 = vpack.c.b16 %v186, %v186
    %v203 = vpack.c.b16 %v187, %v187
    %v204 = vpack.c.b16 %v188, %v188
    %v205 = vpack.c.b16 %v189, %v189
    %v206 = vpack.c.b16 %v190, %v190
    %v207 = vpack.c.b16 %v191, %v191
    %v208 = vpack.c.b16 %v192, %v192
    %v209 = vpack.c.b16 %v193, %v193
    %v210 = vpack.c.b16 %v194, %v194
    %v211 = vpack.c.b16 %v195, %v195
    %v212 = vpack.c.b16 %v196, %v196
    %v213 = vpack.c.b16 %v197, %v197
    %v214 = vpack.c.b16 %v198, %v198
    %231 = vst [vmem:[#allocation2] sm:$0xf] %v199
    %232 = vst [vmem:[#allocation2 + $0x4] sm:$0xf] %v200
    %233 = vst [vmem:[#allocation2 + $0x8] sm:$0xf] %v201
    %234 = vst [vmem:[#allocation2 + $0xc] sm:$0xf] %v202
    %235 = vst [vmem:[#allocation2 + $0x10] sm:$0xf] %v203
    %236 = vst [vmem:[#allocation2 + $0x14] sm:$0xf] %v204
    %237 = vst [vmem:[#allocation2 + $0x18] sm:$0xf] %v205
    %238 = vst [vmem:[#allocation2 + $0x1c] sm:$0xf] %v206
    %239 = vst [vmem:[#allocation2 + $0x20] sm:$0xf] %v207
    %240 = vst [vmem:[#allocation2 + $0x24] sm:$0xf] %v208
    %241 = vst [vmem:[#allocation2 + $0x28] sm:$0xf] %v209
    %242 = vst [vmem:[#allocation2 + $0x2c] sm:$0xf] %v210
    %243 = vst [vmem:[#allocation2 + $0x30] sm:$0xf] %v211
    %244 = vst [vmem:[#allocation2 + $0x34] sm:$0xf] %v212
    %245 = vst [vmem:[#allocation2 + $0x38] sm:$0xf] %v213
    %246 = vst [vmem:[#allocation2 + $0x3c] sm:$0xf] %v214
    // Predicated region
    $region10: #{tpu_custom_call.1} parent=1 // pred_check
      _
    $region11: #{tpu_custom_call.1} parent=1 // pred_check_branch
      %248 = sbr.rel (0) target = $region13
    $region12: #{tpu_custom_call.1} parent=1 // pred_region
      %s250 = ssub.s32 1024, 1024
      %251 = vsyncadd [#allocation3], %s250
      %s252 = sshll.u32 [#allocation2], 4
      %s253 = int_to_ptr.vmem [resolvable:$true] %s252
      %258 = dma.vmem_to_hbm [thread:$0]  %s253, 1024, %s2, [#allocation3], 64, 64, 4
    $region13: #{tpu_custom_call.1} parent=1 // pred_fallthru
      _
    // Predicated region
    $region14: #{tpu_custom_call.1} parent=1 // pred_check
      _
    $region15: #{tpu_custom_call.1} parent=1 // pred_check_branch
      %260 = sbr.rel (0) target = $region17
    $region16: #{tpu_custom_call.1} parent=1 // pred_region
      %261 = dma.done [#allocation3], 1024
    $region17: #{tpu_custom_call.1} parent=1 // pred_fallthru
      _
    %262 = vsyncpa [#allocation3], 1

</llo_original>
